<compile_context>
chip_gen: v6e
topology: v6e:2x2x1
jax: 0.10.0
libtpu: 0.0.40
codegen_flags: <defaults>
</compile_context>

<pallas_src>
import jax
import jax.numpy as jnp
from jax.experimental import pallas as pl
from jax.experimental.pallas import tpu as pltpu

D_MODEL = 8          # CNN out-channels == transformer d_model == FFN input_dim
KERNEL_SIZE = 3      # Conv1d kernel size (padding='same', odd kernel)
PAD = (KERNEL_SIZE - 1) // 2
HIDDEN_DIM = 32      # FFN hidden dim

# ---- packed parameter buffer layout: (56, 128) f32, one DMA ---------------
# All weight blocks start on 8-sublane-aligned rows.
_CONV_ROWS = 16                   # conv weight slot (K*C rows used, rest zero)
_R_CONV = 0                       # rows [0, 16),  cols [0, D)     (K*C, D) im2col weight
_R_QKV = 16                       # rows [16, 24), cols [0, 3D)    (D, 3D)
_R_WO = 24                        # rows [24, 32), cols [0, D)     (D, D)
_R_W1 = 32                        # rows [32, 40), cols [0, H)     (D, H)
_R_W2 = 40                        # row 40,        cols [0, H)     (1, H)
_R_BIAS = 48                      # rows 48..52: b_conv, b_qkv, b_o, b1, b2
_P_ROWS, _P_COLS = 56, 128


def _stat_arb_kernel(xcol_ref, p_ref, weps_ref, attn_ref):
    D, H = D_MODEL, HIDDEN_DIM
    BL, KC = xcol_ref.shape          # (B*L, 16)  im2col'd input, zero-padded cols
    B = weps_ref.shape[0]
    L = attn_ref.shape[1]

    # ---- unpack parameters from the single packed VMEM buffer ----
    w_conv = p_ref[_R_CONV:_R_CONV + KC, 0:D]                # (KC, D)
    w_qkv = p_ref[_R_QKV:_R_QKV + D, 0:3 * D]                # (D, 3D)
    w_o = p_ref[_R_WO:_R_WO + D, 0:D]                        # (D, D)
    w1 = p_ref[_R_W1:_R_W1 + D, 0:H]                         # (D, H)
    w2 = p_ref[_R_W2:_R_W2 + 8, 0:H][0:1, :]                 # (1, H)
    bias = p_ref[_R_BIAS:_R_BIAS + 8, :]                     # (8, 128) value
    b_conv = bias[0:1, 0:D]
    b_qkv = bias[1:2, 0:3 * D]
    b_o = bias[2:3, 0:D]
    b1 = bias[3:4, 0:H]
    b2 = bias[4:5, 0:1]

    # ---- Conv1d(C -> D, k=3, padding='same') as ONE im2col matmul + ReLU ----
    xcol = xcol_ref[...]                                     # (B*L, KC)
    z = jnp.dot(xcol, w_conv, preferred_element_type=jnp.float32) + b_conv
    z = jnp.maximum(z, 0.0)                                  # (B*L, D)

    # ---- fused Q/K/V projection: one (B*L, D) @ (D, 3D) matmul ----
    qkv = jnp.dot(z, w_qkv, preferred_element_type=jnp.float32) + b_qkv
    q = qkv[:, 0:D].reshape(B, L, D)
    k = qkv[:, D:2 * D].reshape(B, L, D)
    v = qkv[:, 2 * D:3 * D].reshape(B, L, D)

    # ---- single-head self-attention (exact softmax: attn is an output) ----
    s = jnp.einsum('bqd,bkd->bqk', q, k,
                   preferred_element_type=jnp.float32) * (1.0 / float(D) ** 0.5)
    s = s - jnp.max(s, axis=-1, keepdims=True)
    e = jnp.exp(s)
    attn = e / jnp.sum(e, axis=-1, keepdims=True)            # (B, L, L)
    attn_ref[...] = attn.reshape(BL, L)                      # 2-D slab store

    ao = jnp.einsum('bqk,bkd->bqd', attn, v,
                    preferred_element_type=jnp.float32)      # (B, L, D)

    # ---- mean-pool first (mean is linear), then output projection ----
    pooled = jnp.sum(ao, axis=1) * (1.0 / float(L))          # (B, D)
    feats = jnp.dot(pooled, w_o, preferred_element_type=jnp.float32) + b_o

    # ---- FFN: Linear(D -> H) + ReLU + Linear(H -> 1) ----
    h1 = jnp.maximum(
        jnp.dot(feats, w1, preferred_element_type=jnp.float32) + b1, 0.0)
    weps_ref[...] = jnp.sum(h1 * w2, axis=-1, keepdims=True) + b2   # (B, 1)


def init_params(num_features, hidden_dim, key):
    """Deterministic synthetic parameters (biases stored as (1, dim))."""
    ks = jax.random.split(key, 8)
    s = 0.3
    f32 = jnp.float32
    return {
        'w_conv': s * jax.random.normal(ks[0], (D_MODEL, num_features, KERNEL_SIZE), f32),
        'b_conv': jnp.zeros((1, D_MODEL), f32),
        'w_q': s * jax.random.normal(ks[1], (D_MODEL, D_MODEL), f32),
        'b_q': jnp.zeros((1, D_MODEL), f32),
        'w_k': s * jax.random.normal(ks[2], (D_MODEL, D_MODEL), f32),
        'b_k': jnp.zeros((1, D_MODEL), f32),
        'w_v': s * jax.random.normal(ks[3], (D_MODEL, D_MODEL), f32),
        'b_v': jnp.zeros((1, D_MODEL), f32),
        'w_o': s * jax.random.normal(ks[4], (D_MODEL, D_MODEL), f32),
        'b_o': jnp.zeros((1, D_MODEL), f32),
        'w1': s * jax.random.normal(ks[5], (D_MODEL, hidden_dim), f32),
        'b1': jnp.zeros((1, hidden_dim), f32),
        'w2': s * jax.random.normal(ks[6], (hidden_dim, 1), f32),
        'b2': jnp.zeros((1, 1), f32),
    }


def pack_params(p):
    """Pack all tiny parameter tensors into one 128-lane (56, 128) f32 buffer."""
    D, H, K = D_MODEL, HIDDEN_DIM, KERNEL_SIZE
    C = p['w_conv'].shape[1]
    kc = K * C
    assert kc <= _CONV_ROWS, "conv im2col slot too small for num_features"
    P = jnp.zeros((_P_ROWS, _P_COLS), jnp.float32)
    # im2col conv weight: row index = k*C + c, col = out-channel d.
    wc = jnp.transpose(p['w_conv'], (2, 1, 0)).reshape(kc, D)
    P = P.at[_R_CONV:_R_CONV + kc, 0:D].set(wc)
    P = P.at[_R_QKV:_R_QKV + D, 0:3 * D].set(
        jnp.concatenate([p['w_q'], p['w_k'], p['w_v']], axis=1))
    P = P.at[_R_WO:_R_WO + D, 0:D].set(p['w_o'])
    P = P.at[_R_W1:_R_W1 + D, 0:H].set(p['w1'])
    P = P.at[_R_W2, 0:H].set(p['w2'][:, 0])
    P = P.at[_R_BIAS + 0, 0:D].set(p['b_conv'][0])
    P = P.at[_R_BIAS + 1, 0:3 * D].set(
        jnp.concatenate([p['b_q'][0], p['b_k'][0], p['b_v'][0]]))
    P = P.at[_R_BIAS + 2, 0:D].set(p['b_o'][0])
    P = P.at[_R_BIAS + 3, 0:H].set(p['b1'][0])
    P = P.at[_R_BIAS + 4, 0:1].set(p['b2'][0])
    return P


def _im2col(x):
    """(B, C, L) -> zero-padded im2col slab (B*L, _CONV_ROWS); layout only."""
    B, C, L = x.shape
    kc = KERNEL_SIZE * C
    xp = jnp.pad(x, ((0, 0), (0, 0), (PAD, PAD)))                        # (B, C, L+2)
    cols = jnp.stack([xp[:, :, k:k + L] for k in range(KERNEL_SIZE)], axis=1)  # (B, K, C, L)
    xcol = jnp.transpose(cols, (0, 3, 1, 2)).reshape(B * L, kc)          # row=(b,t), col=k*C+c
    if kc < _CONV_ROWS:
        xcol = jnp.pad(xcol, ((0, 0), (0, _CONV_ROWS - kc)))
    return xcol


@jax.jit
def stat_arb_forward(x, packed_params):
    """x: (B, num_features, L) f32 -> (w_eps (B, 1), attn (B, L, L))."""
    B, C, L = x.shape
    xcol = _im2col(x)
    vmem = lambda: pl.BlockSpec(memory_space=pltpu.MemorySpace.VMEM)
    w_eps, attn2d = pl.pallas_call(
        _stat_arb_kernel,
        out_shape=(jax.ShapeDtypeStruct((B, 1), jnp.float32),
                   jax.ShapeDtypeStruct((B * L, L), jnp.float32)),
        in_specs=[vmem(), vmem()],
        out_specs=(vmem(), vmem()),
    )(xcol, packed_params)
    return w_eps, attn2d.reshape(B, L, L)


def ref_forward(x, p):
    """Pure-JAX reference of the (reconstructed) StatArbModel forward."""
    D = D_MODEL
    z = jax.lax.conv_general_dilated(
        x, p['w_conv'], window_strides=(1,), padding='SAME',
        dimension_numbers=('NCH', 'OIH', 'NCH'))                 # (B, D, L)
    z = jnp.maximum(z + p['b_conv'][0][None, :, None], 0.0)
    z = jnp.transpose(z, (0, 2, 1))                              # (B, L, D)
    q = z @ p['w_q'] + p['b_q']
    k = z @ p['w_k'] + p['b_k']
    v = z @ p['w_v'] + p['b_v']
    s = jnp.einsum('bqd,bkd->bqk', q, k) / jnp.sqrt(float(D))
    attn = jax.nn.softmax(s, axis=-1)
    ao = jnp.einsum('bqk,bkd->bqd', attn, v)
    feats = jnp.mean(ao, axis=1) @ p['w_o'] + p['b_o']
    h1 = jnp.maximum(feats @ p['w1'] + p['b1'], 0.0)
    return h1 @ p['w2'] + p['b2'], attn


if __name__ == "__main__":
    B, num_features, input_length = 2, 4, 16

    key = jax.random.PRNGKey(0)
    k_x, k_p = jax.random.split(key)
    x = jax.random.normal(k_x, (B, num_features, input_length), jnp.float32)
    params = init_params(num_features, HIDDEN_DIM, k_p)
    packed = pack_params(params)

    w_eps, attn_weights = stat_arb_forward(x, packed)
    jax.block_until_ready((w_eps, attn_weights))

    assert w_eps.shape == (B, 1)
    assert attn_weights.shape == (B, input_length, input_length)
    assert bool(jnp.all(jnp.isfinite(w_eps)))
    assert bool(jnp.all(jnp.isfinite(attn_weights)))
    # exact softmax -> attention rows sum to 1 within f32 rounding
    assert bool(jnp.allclose(jnp.sum(attn_weights, axis=-1), 1.0, atol=1e-5))

    # sanity check against a pure-JAX reference (tolerance covers MXU precision)
    w_ref, a_ref = ref_forward(x, params)
    assert bool(jnp.allclose(attn_weights, a_ref, atol=2e-2)), "attn mismatch"
    assert bool(jnp.allclose(w_eps, w_ref, atol=2e-2)), "w_eps mismatch"

    print("KERNEL_OK")
</pallas_src>

<mosaic_0001>
module attributes {stable_mosaic.version = 11 : i64} {
  func.func @_stat_arb_kernel(%arg0: memref<32x16xf32, #tpu.memory_space<vmem>>, %arg1: memref<56x128xf32, #tpu.memory_space<vmem>>, %arg2: memref<2x1xf32, #tpu.memory_space<vmem>>, %arg3: memref<32x16xf32, #tpu.memory_space<vmem>>) attributes {dimension_semantics = [], scalar_prefetch = 0 : i64, scratch_operands = 0 : i64, tpu.core_type = #tpu.core_type<tc>} {
    %c0 = arith.constant 0 : index
    %c0_0 = arith.constant 0 : index
    %0 = vector.load %arg1[%c0, %c0_0] : memref<56x128xf32, #tpu.memory_space<vmem>>, vector<16x8xf32>
    %c16 = arith.constant 16 : index
    %c0_1 = arith.constant 0 : index
    %1 = vector.load %arg1[%c16, %c0_1] : memref<56x128xf32, #tpu.memory_space<vmem>>, vector<8x24xf32>
    %c24 = arith.constant 24 : index
    %c0_2 = arith.constant 0 : index
    %2 = vector.load %arg1[%c24, %c0_2] : memref<56x128xf32, #tpu.memory_space<vmem>>, vector<8x8xf32>
    %c32 = arith.constant 32 : index
    %c0_3 = arith.constant 0 : index
    %3 = vector.load %arg1[%c32, %c0_3] : memref<56x128xf32, #tpu.memory_space<vmem>>, vector<8x32xf32>
    %c40 = arith.constant 40 : index
    %c0_4 = arith.constant 0 : index
    %4 = vector.load %arg1[%c40, %c0_4] : memref<56x128xf32, #tpu.memory_space<vmem>>, vector<8x32xf32>
    %5 = vector.extract_strided_slice %4 {offsets = [0, 0], sizes = [1, 32], strides = [1, 1]} : vector<8x32xf32> to vector<1x32xf32>
    %c48 = arith.constant 48 : index
    %c0_5 = arith.constant 0 : index
    %6 = vector.load %arg1[%c48, %c0_5] : memref<56x128xf32, #tpu.memory_space<vmem>>, vector<8x128xf32>
    %7 = vector.extract_strided_slice %6 {offsets = [0, 0], sizes = [1, 8], strides = [1, 1]} : vector<8x128xf32> to vector<1x8xf32>
    %8 = vector.extract_strided_slice %6 {offsets = [1, 0], sizes = [1, 24], strides = [1, 1]} : vector<8x128xf32> to vector<1x24xf32>
    %9 = vector.extract_strided_slice %6 {offsets = [2, 0], sizes = [1, 8], strides = [1, 1]} : vector<8x128xf32> to vector<1x8xf32>
    %10 = vector.extract_strided_slice %6 {offsets = [3, 0], sizes = [1, 32], strides = [1, 1]} : vector<8x128xf32> to vector<1x32xf32>
    %11 = vector.extract_strided_slice %6 {offsets = [4, 0], sizes = [1, 1], strides = [1, 1]} : vector<8x128xf32> to vector<1x1xf32>
    %c0_6 = arith.constant 0 : index
    %c0_7 = arith.constant 0 : index
    %12 = vector.load %arg0[%c0_6, %c0_7] : memref<32x16xf32, #tpu.memory_space<vmem>>, vector<32x16xf32>
    %cst = arith.constant dense<0.000000e+00> : vector<32x8xf32>
    %13 = tpu.matmul %12, %0, %cst {dimension_numbers = #tpu.dot_dimension_numbers<[1], [0], [0], [1], [0, 0, 1, 1], [], []>} : vector<32x16xf32>, vector<16x8xf32>, vector<32x8xf32> -> vector<32x8xf32>
    %14 = vector.broadcast %7 : vector<1x8xf32> to vector<32x8xf32>
    %15 = arith.addf %13, %14 : vector<32x8xf32>
    %cst_8 = arith.constant 0.000000e+00 : f32
    %16 = vector.broadcast %cst_8 : f32 to vector<32x8xf32>
    %17 = arith.maximumf %15, %16 : vector<32x8xf32>
    %cst_9 = arith.constant dense<0.000000e+00> : vector<32x24xf32>
    %18 = tpu.matmul %17, %1, %cst_9 {dimension_numbers = #tpu.dot_dimension_numbers<[1], [0], [0], [1], [0, 0, 1, 1], [], []>} : vector<32x8xf32>, vector<8x24xf32>, vector<32x24xf32> -> vector<32x24xf32>
    %19 = vector.broadcast %8 : vector<1x24xf32> to vector<32x24xf32>
    %20 = arith.addf %18, %19 : vector<32x24xf32>
    %21 = vector.extract_strided_slice %20 {offsets = [0, 0], sizes = [32, 8], strides = [1, 1]} : vector<32x24xf32> to vector<32x8xf32>
    %22 = vector.shape_cast %21 : vector<32x8xf32> to vector<2x16x8xf32>
    %23 = vector.extract_strided_slice %20 {offsets = [0, 8], sizes = [32, 8], strides = [1, 1]} : vector<32x24xf32> to vector<32x8xf32>
    %24 = vector.shape_cast %23 : vector<32x8xf32> to vector<2x16x8xf32>
    %25 = vector.extract_strided_slice %20 {offsets = [0, 16], sizes = [32, 8], strides = [1, 1]} : vector<32x24xf32> to vector<32x8xf32>
    %26 = vector.shape_cast %25 : vector<32x8xf32> to vector<2x16x8xf32>
    "tpu.trace_start"() <{level = 10 : i32, message = "bqd,bkd->bqk"}> : () -> ()
    %cst_10 = arith.constant dense<0.000000e+00> : vector<2x16x16xf32>
    %27 = tpu.matmul %22, %24, %cst_10 {dimension_numbers = #tpu.dot_dimension_numbers<[2], [2], [1], [1], [0, 0, 0, 1, 1, 1], [0], [0]>} : vector<2x16x8xf32>, vector<2x16x8xf32>, vector<2x16x16xf32> -> vector<2x16x16xf32>
    "tpu.trace_stop"() : () -> ()
    %cst_11 = arith.constant 0.353553385 : f32
    %28 = vector.broadcast %cst_11 : f32 to vector<2x16x16xf32>
    %29 = arith.mulf %27, %28 : vector<2x16x16xf32>
    %cst_12 = arith.constant dense<0xFF800000> : vector<2x16xf32>
    %30 = vector.multi_reduction <maximumf>, %29, %cst_12 [2] : vector<2x16x16xf32> to vector<2x16xf32>
    %31 = vector.shape_cast %30 : vector<2x16xf32> to vector<2x16x1xf32>
    %32 = vector.broadcast %31 : vector<2x16x1xf32> to vector<2x16x16xf32>
    %33 = arith.subf %29, %32 : vector<2x16x16xf32>
    %34 = math.exp %33 : vector<2x16x16xf32>
    %cst_13 = arith.constant dense<0.000000e+00> : vector<2x16xf32>
    %35 = vector.multi_reduction <add>, %34, %cst_13 [2] : vector<2x16x16xf32> to vector<2x16xf32>
    %36 = vector.shape_cast %35 : vector<2x16xf32> to vector<2x16x1xf32>
    %37 = vector.broadcast %36 : vector<2x16x1xf32> to vector<2x16x16xf32>
    %38 = arith.divf %34, %37 : vector<2x16x16xf32>
    %39 = vector.shape_cast %38 : vector<2x16x16xf32> to vector<32x16xf32>
    %c0_14 = arith.constant 0 : index
    %c0_15 = arith.constant 0 : index
    %40 = vector.load %arg3[%c0_14, %c0_15] : memref<32x16xf32, #tpu.memory_space<vmem>>, vector<32x16xf32>
    tpu.vector_store %arg3[%c0_14, %c0_15], %39 {strides = array<i32>} : memref<32x16xf32, #tpu.memory_space<vmem>>, vector<32x16xf32>,
    "tpu.trace_start"() <{level = 10 : i32, message = "bqk,bkd->bqd"}> : () -> ()
    %cst_16 = arith.constant dense<0.000000e+00> : vector<2x16x8xf32>
    %41 = tpu.matmul %38, %26, %cst_16 {dimension_numbers = #tpu.dot_dimension_numbers<[2], [1], [1], [2], [0, 0, 0, 1, 1, 2], [0], [0]>} : vector<2x16x16xf32>, vector<2x16x8xf32>, vector<2x16x8xf32> -> vector<2x16x8xf32>
    "tpu.trace_stop"() : () -> ()
    %cst_17 = arith.constant dense<0.000000e+00> : vector<2x8xf32>
    %42 = vector.multi_reduction <add>, %41, %cst_17 [1] : vector<2x16x8xf32> to vector<2x8xf32>
    %cst_18 = arith.constant 6.250000e-02 : f32
    %43 = vector.broadcast %cst_18 : f32 to vector<2x8xf32>
    %44 = arith.mulf %42, %43 : vector<2x8xf32>
    %cst_19 = arith.constant dense<0.000000e+00> : vector<2x8xf32>
    %45 = tpu.matmul %44, %2, %cst_19 {dimension_numbers = #tpu.dot_dimension_numbers<[1], [0], [0], [1], [0, 0, 1, 1], [], []>} : vector<2x8xf32>, vector<8x8xf32>, vector<2x8xf32> -> vector<2x8xf32>
    %46 = vector.broadcast %9 : vector<1x8xf32> to vector<2x8xf32>
    %47 = arith.addf %45, %46 : vector<2x8xf32>
    %cst_20 = arith.constant dense<0.000000e+00> : vector<2x32xf32>
    %48 = tpu.matmul %47, %3, %cst_20 {dimension_numbers = #tpu.dot_dimension_numbers<[1], [0], [0], [1], [0, 0, 1, 1], [], []>} : vector<2x8xf32>, vector<8x32xf32>, vector<2x32xf32> -> vector<2x32xf32>
    %49 = vector.broadcast %10 : vector<1x32xf32> to vector<2x32xf32>
    %50 = arith.addf %48, %49 : vector<2x32xf32>
    %cst_21 = arith.constant 0.000000e+00 : f32
    %51 = vector.broadcast %cst_21 : f32 to vector<2x32xf32>
    %52 = arith.maximumf %50, %51 : vector<2x32xf32>
    %53 = vector.broadcast %5 : vector<1x32xf32> to vector<2x32xf32>
    %54 = arith.mulf %52, %53 : vector<2x32xf32>
    %cst_22 = arith.constant dense<0.000000e+00> : vector<2xf32>
    %55 = vector.multi_reduction <add>, %54, %cst_22 [1] : vector<2x32xf32> to vector<2xf32>
    %56 = vector.shape_cast %55 : vector<2xf32> to vector<2x1xf32>
    %57 = vector.broadcast %11 : vector<1x1xf32> to vector<2x1xf32>
    %58 = arith.addf %56, %57 : vector<2x1xf32>
    %c0_23 = arith.constant 0 : index
    %c0_24 = arith.constant 0 : index
    %59 = vector.load %arg2[%c0_23, %c0_24] : memref<2x1xf32, #tpu.memory_space<vmem>>, vector<2x1xf32>
    tpu.vector_store %arg2[%c0_23, %c0_24], %58 {strides = array<i32>} : memref<2x1xf32, #tpu.memory_space<vmem>>, vector<2x1xf32>,
    return
  }
}

</mosaic_0001>

<llo_original>
// kernel: stat_arb_forward.1
$region0: #{stat_arb_forward.1}
  #allocation0 [shape = 'u32[]', space=smem, size = 0x4, offset = 0x4, fixed_abs, tag = 'smem constant byte address 0x4 - core index']
  #allocation1 [shape = 'u32[144,128]{1,0:T(1,128)}', space=vmem, size = 0x12000, scoped, tag = 'internal scratch']
  %s0 = inlined_call_operand.vmem [shape: f32[32,16], index: 0, kind: input, shape index: {}]
  %s1 = inlined_call_operand.vmem [shape: f32[56,128], index: 1, kind: input, shape index: {}]
  %s2 = inlined_call_operand.vmem [shape: f32[2,1], index: 2, kind: output, shape index: {0}]
  %s3 = inlined_call_operand.hbm [shape: f32[32,16], index: 3, kind: output, shape index: {1}]
  %4 = xla_tuple %s2, %s3
  %s5 = sld [smem:[#allocation0]]
  $region26: #{stat_arb_forward.1} parent=0
    _
  %s7 = ssub.s32 1, %s5
  %s8 = scalar_select 0, %s7, %s5
  $region1: #{stat_arb_forward.1} parent=0
    #allocation2 [shape = 'u8[16384]{0}', space=vmem, size = 0x4000, scoped, tag = 'output window, operand 1, single buffered']
    #allocation3 [shape = 's32[1]{0}', space=sflag, size = 0x4, scoped, tag = 'scoped memory for stat_arb_forward.1']
    %9 = vsyncpa [#allocation3], 0
    // Predicated region
    $region2: #{stat_arb_forward.1} parent=1 // pred_check
      _
    $region3: #{stat_arb_forward.1} parent=1 // pred_check_branch
      %11 = sbr.rel (0) target = $region5
    $region4: #{stat_arb_forward.1} parent=1 // pred_region
      _
    $region5: #{stat_arb_forward.1} parent=1 // pred_fallthru
      _
    // Predicated region
    $region6: #{stat_arb_forward.1} parent=1 // pred_check
      _
    $region7: #{stat_arb_forward.1} parent=1 // pred_check_branch
      %13 = sbr.rel (0) target = $region9
    $region8: #{stat_arb_forward.1} parent=1 // pred_region
      _
    $region9: #{stat_arb_forward.1} parent=1 // pred_fallthru
      _
    %v14 = vld [vmem:[%s1] sm:$0xff]
    %v15 = vld [vmem:[%s1 + $0x8] sm:$0xff]
    %v16 = vld [vmem:[%s1 + $0x10] sm:$0xff]
    %v17 = vld [vmem:[%s1 + $0x18] sm:$0xff]
    %v18 = vld [vmem:[%s1 + $0x20] sm:$0xff]
    %v19 = vld [vmem:[%s1 + $0x28] sm:$0xff]
    %v20 = vld [vmem:[%s1 + $0x30] sm:$0xff]
    %v21 = vld [vmem:[%s0] sm:$0xff]
    %v22 = vld [vmem:[%s0 + $0x8] sm:$0xff]
    %v23 = vld [vmem:[%s0 + $0x10] sm:$0xff]
    %v24 = vld [vmem:[%s0 + $0x18] sm:$0xff]
    %v25 = vlaneseq
    %v26 = vshrl.u32 %v25, 7
    %v27 = vsub.s32 0, %v26
    %v28 = vrot.slane %v20, %v27
    %vm29 = vcmask 130048
    %v31 = vsel %vm29, %v21, 0
    %v34 = vsel %vm29, %v22, 0
    %v37 = vsel %vm29, %v23, 0
    %v40 = vsel %vm29, %v24, 0
    %42 = vmatprep.subr.mxu0 0.0
    %43 = vmatpush1.msra.mxu0 0.0
    %44 = vmatprep.subr.mxu0 0.0
    %45 = vmatpush1.msra.mxu0 0.0
    %46 = vmatprep.subr.mxu0 0.0
    %47 = vmatpush1.msra.mxu0 0.0
    %48 = vmatprep.subr.mxu0 0.0
    %49 = vmatpush1.msra.mxu0 0.0
    %50 = vmatprep.subr.mxu0 0.0
    %51 = vmatpush1.msra.mxu0 0.0
    %52 = vmatprep.subr.mxu0 0.0
    %53 = vmatpush1.msra.mxu0 0.0
    %54 = vmatprep.subr.mxu0 0.0
    %55 = vmatpush1.msra.mxu0 0.0
    %56 = vmatprep.subr.mxu0 0.0
    %57 = vmatpush1.msra.mxu0 0.0
    %58 = vmatprep.subr.mxu0 0.0
    %59 = vmatpush1.msra.mxu0 0.0
    %60 = vmatprep.subr.mxu0 0.0
    %61 = vmatpush1.msra.mxu0 0.0
    %62 = vmatprep.subr.mxu0 0.0
    %63 = vmatpush1.msra.mxu0 0.0
    %64 = vmatprep.subr.mxu0 0.0
    %65 = vmatpush1.msra.mxu0 0.0
    %66 = vmatprep.subr.mxu0 0.0
    %67 = vmatpush1.msra.mxu0 0.0
    %68 = vmatprep.subr.mxu0 0.0
    %69 = vmatpush1.msra.mxu0 0.0
    %70 = vmatprep.subr.mxu0 0.0
    %71 = vmatpush1.msra.mxu0 %v15
    %72 = vmatprep.subr.mxu0 0.0
    %73 = vmatpush1.msra.mxu0 %v14
    %74 = vmatprep.subr.mxu0 0.0
    %75 = vmatpush2.msra.mxu0 0.0
    %76 = vmatprep.subr.mxu0 0.0
    %77 = vmatpush2.msra.mxu0 0.0
    %78 = vmatprep.subr.mxu0 0.0
    %79 = vmatpush2.msra.mxu0 0.0
    %80 = vmatprep.subr.mxu0 0.0
    %81 = vmatpush2.msra.mxu0 0.0
    %82 = vmatprep.subr.mxu0 0.0
    %83 = vmatpush2.msra.mxu0 0.0
    %84 = vmatprep.subr.mxu0 0.0
    %85 = vmatpush2.msra.mxu0 0.0
    %86 = vmatprep.subr.mxu0 0.0
    %87 = vmatpush2.msra.mxu0 0.0
    %88 = vmatprep.subr.mxu0 0.0
    %89 = vmatpush2.msra.mxu0 0.0
    %90 = vmatprep.subr.mxu0 0.0
    %91 = vmatpush2.msra.mxu0 0.0
    %92 = vmatprep.subr.mxu0 0.0
    %93 = vmatpush2.msra.mxu0 0.0
    %94 = vmatprep.subr.mxu0 0.0
    %95 = vmatpush2.msra.mxu0 0.0
    %96 = vmatprep.subr.mxu0 0.0
    %97 = vmatpush2.msra.mxu0 0.0
    %98 = vmatprep.subr.mxu0 0.0
    %99 = vmatpush2.msra.mxu0 0.0
    %100 = vmatprep.subr.mxu0 0.0
    %101 = vmatpush2.msra.mxu0 0.0
    %102 = vmatprep.subr.mxu0 0.0
    %103 = vmatpush2.msra.mxu0 0.0
    %104 = vmatprep.subr.mxu0 0.0
    %105 = vmatpush2.msra.mxu0 0.0
    %106 = vmatprep.mubr.f32.mxu0 0.0
    %107 = vmatmul.mubr.f32.gmra.mxu0 %v31
    %v108 = vpop.f32.mrf.mxu0
    %v109 = vadd.f32 %v28, %v108
    %v110 = vpop.f32.mrf.mxu0
    %111 = vmatprep.mubr.f32.mxu0 0.0
    %112 = vmatmul.mubr.f32.gmra.mxu0 %v34
    %v113 = vpop.f32.mrf.mxu0
    %v114 = vadd.f32 %v28, %v113
    %v115 = vpop.f32.mrf.mxu0
    %116 = vmatprep.mubr.f32.mxu0 0.0
    %117 = vmatmul.mubr.f32.gmra.mxu0 %v37
    %v118 = vpop.f32.mrf.mxu0
    %v119 = vadd.f32 %v28, %v118
    %v120 = vpop.f32.mrf.mxu0
    %121 = vmatprep.mubr.f32.mxu0 0.0
    %122 = vmatmul.mubr.f32.gmra.mxu0 %v40
    %v123 = vpop.f32.mrf.mxu0
    %v124 = vadd.f32 %v28, %v123
    %v125 = vpop.f32.mrf.mxu0
    %126 = vdwg.mxu0
    %v127 = vmax.f32 %v109, 0.0
    %v128 = vmax.f32 %v114, 0.0
    %v129 = vmax.f32 %v119, 0.0
    %v130 = vmax.f32 %v124, 0.0
    %v131 = vlaneseq
    %v132 = vshrl.u32 %v131, 7
    %v133 = vsub.s32 1, %v132
    %v134 = vrot.slane %v20, %v133
    %vm135 = vcmask 64512
    %v137 = vsel %vm135, %v127, 0
    %v140 = vsel %vm135, %v128, 0
    %v143 = vsel %vm135, %v129, 0
    %v146 = vsel %vm135, %v130, 0
    %148 = vmatprep.subr.mxu0 0.0
    %149 = vmatpush1.msra.mxu0 0.0
    %150 = vmatprep.subr.mxu0 0.0
    %151 = vmatpush1.msra.mxu0 0.0
    %152 = vmatprep.subr.mxu0 0.0
    %153 = vmatpush1.msra.mxu0 0.0
    %154 = vmatprep.subr.mxu0 0.0
    %155 = vmatpush1.msra.mxu0 0.0
    %156 = vmatprep.subr.mxu0 0.0
    %157 = vmatpush1.msra.mxu0 0.0
    %158 = vmatprep.subr.mxu0 0.0
    %159 = vmatpush1.msra.mxu0 0.0
    %160 = vmatprep.subr.mxu0 0.0
    %161 = vmatpush1.msra.mxu0 0.0
    %162 = vmatprep.subr.mxu0 0.0
    %163 = vmatpush1.msra.mxu0 0.0
    %164 = vmatprep.subr.mxu0 0.0
    %165 = vmatpush1.msra.mxu0 0.0
    %166 = vmatprep.subr.mxu0 0.0
    %167 = vmatpush1.msra.mxu0 0.0
    %168 = vmatprep.subr.mxu0 0.0
    %169 = vmatpush1.msra.mxu0 0.0
    %170 = vmatprep.subr.mxu0 0.0
    %171 = vmatpush1.msra.mxu0 0.0
    %172 = vmatprep.subr.mxu0 0.0
    %173 = vmatpush1.msra.mxu0 0.0
    %174 = vmatprep.subr.mxu0 0.0
    %175 = vmatpush1.msra.mxu0 0.0
    %176 = vmatprep.subr.mxu0 0.0
    %177 = vmatpush1.msra.mxu0 0.0
    %178 = vmatprep.subr.mxu0 0.0
    %179 = vmatpush1.msra.mxu0 %v16
    %180 = vmatprep.subr.mxu0 0.0
    %181 = vmatpush2.msra.mxu0 0.0
    %182 = vmatprep.subr.mxu0 0.0
    %183 = vmatpush2.msra.mxu0 0.0
    %184 = vmatprep.subr.mxu0 0.0
    %185 = vmatpush2.msra.mxu0 0.0
    %186 = vmatprep.subr.mxu0 0.0
    %187 = vmatpush2.msra.mxu0 0.0
    %188 = vmatprep.subr.mxu0 0.0
    %189 = vmatpush2.msra.mxu0 0.0
    %190 = vmatprep.subr.mxu0 0.0
    %191 = vmatpush2.msra.mxu0 0.0
    %192 = vmatprep.subr.mxu0 0.0
    %193 = vmatpush2.msra.mxu0 0.0
    %194 = vmatprep.subr.mxu0 0.0
    %195 = vmatpush2.msra.mxu0 0.0
    %196 = vmatprep.subr.mxu0 0.0
    %197 = vmatpush2.msra.mxu0 0.0
    %198 = vmatprep.subr.mxu0 0.0
    %199 = vmatpush2.msra.mxu0 0.0
    %200 = vmatprep.subr.mxu0 0.0
    %201 = vmatpush2.msra.mxu0 0.0
    %202 = vmatprep.subr.mxu0 0.0
    %203 = vmatpush2.msra.mxu0 0.0
    %204 = vmatprep.subr.mxu0 0.0
    %205 = vmatpush2.msra.mxu0 0.0
    %206 = vmatprep.subr.mxu0 0.0
    %207 = vmatpush2.msra.mxu0 0.0
    %208 = vmatprep.subr.mxu0 0.0
    %209 = vmatpush2.msra.mxu0 0.0
    %210 = vmatprep.subr.mxu0 0.0
    %211 = vmatpush2.msra.mxu0 0.0
    %212 = vmatprep.mubr.f32.mxu0 0.0
    %213 = vmatmul.mubr.f32.gmra.mxu0 %v137
    %v214 = vpop.f32.mrf.mxu0
    %v215 = vadd.f32 %v134, %v214
    %v216 = vpop.f32.mrf.mxu0
    %217 = vmatprep.mubr.f32.mxu0 0.0
    %218 = vmatmul.mubr.f32.gmra.mxu0 %v140
    %v219 = vpop.f32.mrf.mxu0
    %v220 = vadd.f32 %v134, %v219
    %v221 = vpop.f32.mrf.mxu0
    %222 = vmatprep.mubr.f32.mxu0 0.0
    %223 = vmatmul.mubr.f32.gmra.mxu0 %v143
    %v224 = vpop.f32.mrf.mxu0
    %v225 = vadd.f32 %v134, %v224
    %v226 = vpop.f32.mrf.mxu0
    %227 = vmatprep.mubr.f32.mxu0 0.0
    %228 = vmatmul.mubr.f32.gmra.mxu0 %v146
    %v229 = vpop.f32.mrf.mxu0
    %v230 = vadd.f32 %v134, %v229
    %v231 = vpop.f32.mrf.mxu0
    %232 = vdwg.mxu0
    %235 = vrot.lane.b32.xlu0 %v215, 120
    %v236 = vpop.permute.xlu0 %235
    %237 = vrot.lane.b32.xlu0 %v220, 120
    %v238 = vpop.permute.xlu0 %237
    %v239 = vsel %vm135, %v215, 0
    %v241 = vsel %vm135, %v220, 0
    %v243 = vsel %vm135, %v236, 0
    %v245 = vsel %vm135, %v238, 0
    %247 = vmatprep.subr.mxu0 0.0
    %248 = vmatpush1.xpose.msra.mxu0 0.0
    %249 = vmatprep.subr.mxu0 0.0
    %250 = vmatpush1.xpose.msra.mxu0 0.0
    %251 = vmatprep.subr.mxu0 0.0
    %252 = vmatpush1.xpose.msra.mxu0 0.0
    %253 = vmatprep.subr.mxu0 0.0
    %254 = vmatpush1.xpose.msra.mxu0 0.0
    %255 = vmatprep.subr.mxu0 0.0
    %256 = vmatpush1.xpose.msra.mxu0 0.0
    %257 = vmatprep.subr.mxu0 0.0
    %258 = vmatpush1.xpose.msra.mxu0 0.0
    %259 = vmatprep.subr.mxu0 0.0
    %260 = vmatpush1.xpose.msra.mxu0 0.0
    %261 = vmatprep.subr.mxu0 0.0
    %262 = vmatpush1.xpose.msra.mxu0 0.0
    %263 = vmatprep.subr.mxu0 0.0
    %264 = vmatpush1.xpose.msra.mxu0 0.0
    %265 = vmatprep.subr.mxu0 0.0
    %266 = vmatpush1.xpose.msra.mxu0 0.0
    %267 = vmatprep.subr.mxu0 0.0
    %268 = vmatpush1.xpose.msra.mxu0 0.0
    %269 = vmatprep.subr.mxu0 0.0
    %270 = vmatpush1.xpose.msra.mxu0 0.0
    %271 = vmatprep.subr.mxu0 0.0
    %272 = vmatpush1.xpose.msra.mxu0 0.0
    %273 = vmatprep.subr.mxu0 0.0
    %274 = vmatpush1.xpose.msra.mxu0 0.0
    %275 = vmatprep.subr.mxu0 0.0
    %276 = vmatpush1.xpose.msra.mxu0 %v245
    %277 = vmatprep.subr.mxu0 0.0
    %278 = vmatpush1.xpose.msra.mxu0 %v243
    %279 = vmatprep.subr.mxu0 0.0
    %280 = vmatpush2.xpose.msra.mxu0 0.0
    %281 = vmatprep.subr.mxu0 0.0
    %282 = vmatpush2.xpose.msra.mxu0 0.0
    %283 = vmatprep.subr.mxu0 0.0
    %284 = vmatpush2.xpose.msra.mxu0 0.0
    %285 = vmatprep.subr.mxu0 0.0
    %286 = vmatpush2.xpose.msra.mxu0 0.0
    %287 = vmatprep.subr.mxu0 0.0
    %288 = vmatpush2.xpose.msra.mxu0 0.0
    %289 = vmatprep.subr.mxu0 0.0
    %290 = vmatpush2.xpose.msra.mxu0 0.0
    %291 = vmatprep.subr.mxu0 0.0
    %292 = vmatpush2.xpose.msra.mxu0 0.0
    %293 = vmatprep.subr.mxu0 0.0
    %294 = vmatpush2.xpose.msra.mxu0 0.0
    %295 = vmatprep.subr.mxu0 0.0
    %296 = vmatpush2.xpose.msra.mxu0 0.0
    %297 = vmatprep.subr.mxu0 0.0
    %298 = vmatpush2.xpose.msra.mxu0 0.0
    %299 = vmatprep.subr.mxu0 0.0
    %300 = vmatpush2.xpose.msra.mxu0 0.0
    %301 = vmatprep.subr.mxu0 0.0
    %302 = vmatpush2.xpose.msra.mxu0 0.0
    %303 = vmatprep.subr.mxu0 0.0
    %304 = vmatpush2.xpose.msra.mxu0 0.0
    %305 = vmatprep.subr.mxu0 0.0
    %306 = vmatpush2.xpose.msra.mxu0 0.0
    %307 = vmatprep.subr.mxu0 0.0
    %308 = vmatpush2.xpose.msra.mxu0 0.0
    %309 = vmatprep.subr.mxu0 0.0
    %310 = vmatpush2.xpose.msra.mxu0 0.0
    %311 = vmatprep.mubr.f32.mxu0 0.0
    %312 = vmatmul.mubr.f32.gmra.mxu0 %v239
    %v313 = vpop.f32.mrf.mxu0
    %v314 = vadd.f32 0.0, %v313
    %v315 = vpop.f32.mrf.mxu0
    %316 = vmatprep.mubr.f32.mxu0 0.0
    %317 = vmatmul.mubr.f32.gmra.mxu0 %v241
    %v318 = vpop.f32.mrf.mxu0
    %v319 = vadd.f32 0.0, %v318
    %v320 = vpop.f32.mrf.mxu0
    %321 = vdwg.mxu0
    %324 = vrot.lane.b32.xlu0 %v225, 120
    %v325 = vpop.permute.xlu0 %324
    %326 = vrot.lane.b32.xlu0 %v230, 120
    %v327 = vpop.permute.xlu0 %326
    %v328 = vsel %vm135, %v225, 0
    %v330 = vsel %vm135, %v230, 0
    %v332 = vsel %vm135, %v325, 0
    %v334 = vsel %vm135, %v327, 0
    %336 = vmatprep.subr.mxu0 0.0
    %337 = vmatpush1.xpose.msra.mxu0 0.0
    %338 = vmatprep.subr.mxu0 0.0
    %339 = vmatpush1.xpose.msra.mxu0 0.0
    %340 = vmatprep.subr.mxu0 0.0
    %341 = vmatpush1.xpose.msra.mxu0 0.0
    %342 = vmatprep.subr.mxu0 0.0
    %343 = vmatpush1.xpose.msra.mxu0 0.0
    %344 = vmatprep.subr.mxu0 0.0
    %345 = vmatpush1.xpose.msra.mxu0 0.0
    %346 = vmatprep.subr.mxu0 0.0
    %347 = vmatpush1.xpose.msra.mxu0 0.0
    %348 = vmatprep.subr.mxu0 0.0
    %349 = vmatpush1.xpose.msra.mxu0 0.0
    %350 = vmatprep.subr.mxu0 0.0
    %351 = vmatpush1.xpose.msra.mxu0 0.0
    %352 = vmatprep.subr.mxu0 0.0
    %353 = vmatpush1.xpose.msra.mxu0 0.0
    %354 = vmatprep.subr.mxu0 0.0
    %355 = vmatpush1.xpose.msra.mxu0 0.0
    %356 = vmatprep.subr.mxu0 0.0
    %357 = vmatpush1.xpose.msra.mxu0 0.0
    %358 = vmatprep.subr.mxu0 0.0
    %359 = vmatpush1.xpose.msra.mxu0 0.0
    %360 = vmatprep.subr.mxu0 0.0
    %361 = vmatpush1.xpose.msra.mxu0 0.0
    %362 = vmatprep.subr.mxu0 0.0
    %363 = vmatpush1.xpose.msra.mxu0 0.0
    %364 = vmatprep.subr.mxu0 0.0
    %365 = vmatpush1.xpose.msra.mxu0 %v334
    %366 = vmatprep.subr.mxu0 0.0
    %367 = vmatpush1.xpose.msra.mxu0 %v332
    %368 = vmatprep.subr.mxu0 0.0
    %369 = vmatpush2.xpose.msra.mxu0 0.0
    %370 = vmatprep.subr.mxu0 0.0
    %371 = vmatpush2.xpose.msra.mxu0 0.0
    %372 = vmatprep.subr.mxu0 0.0
    %373 = vmatpush2.xpose.msra.mxu0 0.0
    %374 = vmatprep.subr.mxu0 0.0
    %375 = vmatpush2.xpose.msra.mxu0 0.0
    %376 = vmatprep.subr.mxu0 0.0
    %377 = vmatpush2.xpose.msra.mxu0 0.0
    %378 = vmatprep.subr.mxu0 0.0
    %379 = vmatpush2.xpose.msra.mxu0 0.0
    %380 = vmatprep.subr.mxu0 0.0
    %381 = vmatpush2.xpose.msra.mxu0 0.0
    %382 = vmatprep.subr.mxu0 0.0
    %383 = vmatpush2.xpose.msra.mxu0 0.0
    %384 = vmatprep.subr.mxu0 0.0
    %385 = vmatpush2.xpose.msra.mxu0 0.0
    %386 = vmatprep.subr.mxu0 0.0
    %387 = vmatpush2.xpose.msra.mxu0 0.0
    %388 = vmatprep.subr.mxu0 0.0
    %389 = vmatpush2.xpose.msra.mxu0 0.0
    %390 = vmatprep.subr.mxu0 0.0
    %391 = vmatpush2.xpose.msra.mxu0 0.0
    %392 = vmatprep.subr.mxu0 0.0
    %393 = vmatpush2.xpose.msra.mxu0 0.0
    %394 = vmatprep.subr.mxu0 0.0
    %395 = vmatpush2.xpose.msra.mxu0 0.0
    %396 = vmatprep.subr.mxu0 0.0
    %397 = vmatpush2.xpose.msra.mxu0 0.0
    %398 = vmatprep.subr.mxu0 0.0
    %399 = vmatpush2.xpose.msra.mxu0 0.0
    %400 = vmatprep.mubr.f32.mxu0 0.0
    %401 = vmatmul.mubr.f32.gmra.mxu0 %v328
    %v402 = vpop.f32.mrf.mxu0
    %v403 = vadd.f32 0.0, %v402
    %v404 = vpop.f32.mrf.mxu0
    %405 = vmatprep.mubr.f32.mxu0 0.0
    %406 = vmatmul.mubr.f32.gmra.mxu0 %v330
    %v407 = vpop.f32.mrf.mxu0
    %v408 = vadd.f32 0.0, %v407
    %v409 = vpop.f32.mrf.mxu0
    %410 = vdwg.mxu0
    %v411 = vmul.f32 %v314, 0.35355338
    %v412 = vmul.f32 %v319, 0.35355338
    %v413 = vmul.f32 %v403, 0.35355338
    %v414 = vmul.f32 %v408, 0.35355338
    %v415 = vsel %vm29, %v411, -inf
    %416 = vmax.xlane.f32.xlu0 %v415
    %v417 = vpop.xlane.xlu0 %416
    %v418 = vsel %vm29, %v412, -inf
    %419 = vmax.xlane.f32.xlu0 %v418
    %v420 = vpop.xlane.xlu0 %419
    %v421 = vsel %vm29, %v413, -inf
    %422 = vmax.xlane.f32.xlu0 %v421
    %v423 = vpop.xlane.xlu0 %422
    %v424 = vsel %vm29, %v414, -inf
    %425 = vmax.xlane.f32.xlu0 %v424
    %v426 = vpop.xlane.xlu0 %425
    %v427 = vsub.f32 %v411, %v417
    %v428 = vsub.f32 %v412, %v420
    %v429 = vsub.f32 %v413, %v423
    %v430 = vsub.f32 %v414, %v426
    %v431 = vmul.f32 %v427, 1.442695
    %v432 = vpow.pop %v431
    %v433 = vmul.f32 %v428, 1.442695
    %v434 = vpow.pop %v433
    %v435 = vmul.f32 %v429, 1.442695
    %v436 = vpow.pop %v435
    %v437 = vmul.f32 %v430, 1.442695
    %v438 = vpow.pop %v437
    %v439 = vsel %vm29, %v432, 0.0
    %440 = vadd.xlane.f32.xlu0 %v439
    %v441 = vpop.xlane.xlu0 %440
    %v442 = vsel %vm29, %v434, 0.0
    %443 = vadd.xlane.f32.xlu0 %v442
    %v444 = vpop.xlane.xlu0 %443
    %v445 = vsel %vm29, %v436, 0.0
    %446 = vadd.xlane.f32.xlu0 %v445
    %v447 = vpop.xlane.xlu0 %446
    %v448 = vsel %vm29, %v438, 0.0
    %449 = vadd.xlane.f32.xlu0 %v448
    %v450 = vpop.xlane.xlu0 %449
    %v451 = vrcp.pop %v441
    %v452 = vmul.f32 %v432, %v451
    %v453 = vrcp.pop %v444
    %v454 = vmul.f32 %v434, %v453
    %v455 = vrcp.pop %v447
    %v456 = vmul.f32 %v436, %v455
    %v457 = vrcp.pop %v450
    %v458 = vmul.f32 %v438, %v457
    %459 = vst.msk [vmem:[#allocation2] sm:$0xff] %vm29, %v452
    %460 = vst.msk [vmem:[#allocation2 + $0x8] sm:$0xff] %vm29, %v454
    %461 = vst.msk [vmem:[#allocation2 + $0x10] sm:$0xff] %vm29, %v456
    %462 = vst.msk [vmem:[#allocation2 + $0x18] sm:$0xff] %vm29, %v458
    %463 = vrot.lane.b32.xlu0 %v215, 112
    %v464 = vpop.permute.xlu0 %463
    %465 = vrot.lane.b32.xlu0 %v220, 112
    %v466 = vpop.permute.xlu0 %465
    %v470 = vsel %vm29, %v452, 0
    %v473 = vsel %vm29, %v454, 0
    %475 = vmatprep.subr.mxu0 0.0
    %476 = vmatpush1.msra.mxu0 0.0
    %477 = vmatprep.subr.mxu0 0.0
    %478 = vmatpush1.msra.mxu0 0.0
    %479 = vmatprep.subr.mxu0 0.0
    %480 = vmatpush1.msra.mxu0 0.0
    %481 = vmatprep.subr.mxu0 0.0
    %482 = vmatpush1.msra.mxu0 0.0
    %483 = vmatprep.subr.mxu0 0.0
    %484 = vmatpush1.msra.mxu0 0.0
    %485 = vmatprep.subr.mxu0 0.0
    %486 = vmatpush1.msra.mxu0 0.0
    %487 = vmatprep.subr.mxu0 0.0
    %488 = vmatpush1.msra.mxu0 0.0
    %489 = vmatprep.subr.mxu0 0.0
    %490 = vmatpush1.msra.mxu0 0.0
    %491 = vmatprep.subr.mxu0 0.0
    %492 = vmatpush1.msra.mxu0 0.0
    %493 = vmatprep.subr.mxu0 0.0
    %494 = vmatpush1.msra.mxu0 0.0
    %495 = vmatprep.subr.mxu0 0.0
    %496 = vmatpush1.msra.mxu0 0.0
    %497 = vmatprep.subr.mxu0 0.0
    %498 = vmatpush1.msra.mxu0 0.0
    %499 = vmatprep.subr.mxu0 0.0
    %500 = vmatpush1.msra.mxu0 0.0
    %501 = vmatprep.subr.mxu0 0.0
    %502 = vmatpush1.msra.mxu0 0.0
    %503 = vmatprep.subr.mxu0 0.0
    %504 = vmatpush1.msra.mxu0 %v466
    %505 = vmatprep.subr.mxu0 0.0
    %506 = vmatpush1.msra.mxu0 %v464
    %507 = vmatprep.subr.mxu0 0.0
    %508 = vmatpush2.msra.mxu0 0.0
    %509 = vmatprep.subr.mxu0 0.0
    %510 = vmatpush2.msra.mxu0 0.0
    %511 = vmatprep.subr.mxu0 0.0
    %512 = vmatpush2.msra.mxu0 0.0
    %513 = vmatprep.subr.mxu0 0.0
    %514 = vmatpush2.msra.mxu0 0.0
    %515 = vmatprep.subr.mxu0 0.0
    %516 = vmatpush2.msra.mxu0 0.0
    %517 = vmatprep.subr.mxu0 0.0
    %518 = vmatpush2.msra.mxu0 0.0
    %519 = vmatprep.subr.mxu0 0.0
    %520 = vmatpush2.msra.mxu0 0.0
    %521 = vmatprep.subr.mxu0 0.0
    %522 = vmatpush2.msra.mxu0 0.0
    %523 = vmatprep.subr.mxu0 0.0
    %524 = vmatpush2.msra.mxu0 0.0
    %525 = vmatprep.subr.mxu0 0.0
    %526 = vmatpush2.msra.mxu0 0.0
    %527 = vmatprep.subr.mxu0 0.0
    %528 = vmatpush2.msra.mxu0 0.0
    %529 = vmatprep.subr.mxu0 0.0
    %530 = vmatpush2.msra.mxu0 0.0
    %531 = vmatprep.subr.mxu0 0.0
    %532 = vmatpush2.msra.mxu0 0.0
    %533 = vmatprep.subr.mxu0 0.0
    %534 = vmatpush2.msra.mxu0 0.0
    %535 = vmatprep.subr.mxu0 0.0
    %536 = vmatpush2.msra.mxu0 0.0
    %537 = vmatprep.subr.mxu0 0.0
    %538 = vmatpush2.msra.mxu0 0.0
    %539 = vmatprep.mubr.f32.mxu0 0.0
    %540 = vmatmul.mubr.f32.gmra.mxu0 %v470
    %v541 = vpop.f32.mrf.mxu0
    %v542 = vadd.f32 0.0, %v541
    %v543 = vpop.f32.mrf.mxu0
    %544 = vmatprep.mubr.f32.mxu0 0.0
    %545 = vmatmul.mubr.f32.gmra.mxu0 %v473
    %v546 = vpop.f32.mrf.mxu0
    %v547 = vadd.f32 0.0, %v546
    %v548 = vpop.f32.mrf.mxu0
    %549 = vdwg.mxu0
    %550 = vrot.lane.b32.xlu0 %v225, 112
    %v551 = vpop.permute.xlu0 %550
    %552 = vrot.lane.b32.xlu0 %v230, 112
    %v553 = vpop.permute.xlu0 %552
    %v557 = vsel %vm29, %v456, 0
    %v560 = vsel %vm29, %v458, 0
    %562 = vmatprep.subr.mxu0 0.0
    %563 = vmatpush1.msra.mxu0 0.0
    %564 = vmatprep.subr.mxu0 0.0
    %565 = vmatpush1.msra.mxu0 0.0
    %566 = vmatprep.subr.mxu0 0.0
    %567 = vmatpush1.msra.mxu0 0.0
    %568 = vmatprep.subr.mxu0 0.0
    %569 = vmatpush1.msra.mxu0 0.0
    %570 = vmatprep.subr.mxu0 0.0
    %571 = vmatpush1.msra.mxu0 0.0
    %572 = vmatprep.subr.mxu0 0.0
    %573 = vmatpush1.msra.mxu0 0.0
    %574 = vmatprep.subr.mxu0 0.0
    %575 = vmatpush1.msra.mxu0 0.0
    %576 = vmatprep.subr.mxu0 0.0
    %577 = vmatpush1.msra.mxu0 0.0
    %578 = vmatprep.subr.mxu0 0.0
    %579 = vmatpush1.msra.mxu0 0.0
    %580 = vmatprep.subr.mxu0 0.0
    %581 = vmatpush1.msra.mxu0 0.0
    %582 = vmatprep.subr.mxu0 0.0
    %583 = vmatpush1.msra.mxu0 0.0
    %584 = vmatprep.subr.mxu0 0.0
    %585 = vmatpush1.msra.mxu0 0.0
    %586 = vmatprep.subr.mxu0 0.0
    %587 = vmatpush1.msra.mxu0 0.0
    %588 = vmatprep.subr.mxu0 0.0
    %589 = vmatpush1.msra.mxu0 0.0
    %590 = vmatprep.subr.mxu0 0.0
    %591 = vmatpush1.msra.mxu0 %v553
    %592 = vmatprep.subr.mxu0 0.0
    %593 = vmatpush1.msra.mxu0 %v551
    %594 = vmatprep.subr.mxu0 0.0
    %595 = vmatpush2.msra.mxu0 0.0
    %596 = vmatprep.subr.mxu0 0.0
    %597 = vmatpush2.msra.mxu0 0.0
    %598 = vmatprep.subr.mxu0 0.0
    %599 = vmatpush2.msra.mxu0 0.0
    %600 = vmatprep.subr.mxu0 0.0
    %601 = vmatpush2.msra.mxu0 0.0
    %602 = vmatprep.subr.mxu0 0.0
    %603 = vmatpush2.msra.mxu0 0.0
    %604 = vmatprep.subr.mxu0 0.0
    %605 = vmatpush2.msra.mxu0 0.0
    %606 = vmatprep.subr.mxu0 0.0
    %607 = vmatpush2.msra.mxu0 0.0
    %608 = vmatprep.subr.mxu0 0.0
    %609 = vmatpush2.msra.mxu0 0.0
    %610 = vmatprep.subr.mxu0 0.0
    %611 = vmatpush2.msra.mxu0 0.0
    %612 = vmatprep.subr.mxu0 0.0
    %613 = vmatpush2.msra.mxu0 0.0
    %614 = vmatprep.subr.mxu0 0.0
    %615 = vmatpush2.msra.mxu0 0.0
    %616 = vmatprep.subr.mxu0 0.0
    %617 = vmatpush2.msra.mxu0 0.0
    %618 = vmatprep.subr.mxu0 0.0
    %619 = vmatpush2.msra.mxu0 0.0
    %620 = vmatprep.subr.mxu0 0.0
    %621 = vmatpush2.msra.mxu0 0.0
    %622 = vmatprep.subr.mxu0 0.0
    %623 = vmatpush2.msra.mxu0 0.0
    %624 = vmatprep.subr.mxu0 0.0
    %625 = vmatpush2.msra.mxu0 0.0
    %626 = vmatprep.mubr.f32.mxu0 0.0
    %627 = vmatmul.mubr.f32.gmra.mxu0 %v557
    %v628 = vpop.f32.mrf.mxu0
    %v629 = vadd.f32 0.0, %v628
    %v630 = vpop.f32.mrf.mxu0
    %631 = vmatprep.mubr.f32.mxu0 0.0
    %632 = vmatmul.mubr.f32.gmra.mxu0 %v560
    %v633 = vpop.f32.mrf.mxu0
    %v634 = vadd.f32 0.0, %v633
    %v635 = vpop.f32.mrf.mxu0
    %636 = vdwg.mxu0
    %v637 = vsel %vm135, %v542, 0.0
    %v638 = vsel %vm135, %v547, 0.0
    %v639 = vadd.f32 %v637, %v638
    %v640 = vrot.slane %v639, 4
    %v641 = vadd.f32 %v639, %v640
    %v642 = vrot.slane %v641, 2
    %v643 = vadd.f32 %v641, %v642
    %v644 = vrot.slane %v643, 1
    %v645 = vadd.f32 %v643, %v644
    %v646 = vsel %vm135, %v629, 0.0
    %v647 = vsel %vm135, %v634, 0.0
    %v648 = vadd.f32 %v646, %v647
    %v649 = vrot.slane %v648, 4
    %v650 = vadd.f32 %v648, %v649
    %v651 = vrot.slane %v650, 2
    %v652 = vadd.f32 %v650, %v651
    %v653 = vrot.slane %v652, 1
    %v654 = vadd.f32 %v652, %v653
    %v655 = vmul.f32 %v645, 0.0625
    %v656 = vmul.f32 %v654, 0.0625
    %v657 = vlaneseq
    %v658 = vshrl.u32 %v657, 7
    %v659 = vsub.s32 2, %v658
    %v660 = vrot.slane %v20, %v659
    %vm663 = vcmask 1041409
    %v664 = vsel %vm663, %v656, %v655
    %v665 = vsel %vm135, %v664, 0
    %667 = vmatprep.subr.mxu0 0.0
    %668 = vmatpush1.msra.mxu0 0.0
    %669 = vmatprep.subr.mxu0 0.0
    %670 = vmatpush1.msra.mxu0 0.0
    %671 = vmatprep.subr.mxu0 0.0
    %672 = vmatpush1.msra.mxu0 0.0
    %673 = vmatprep.subr.mxu0 0.0
    %674 = vmatpush1.msra.mxu0 0.0
    %675 = vmatprep.subr.mxu0 0.0
    %676 = vmatpush1.msra.mxu0 0.0
    %677 = vmatprep.subr.mxu0 0.0
    %678 = vmatpush1.msra.mxu0 0.0
    %679 = vmatprep.subr.mxu0 0.0
    %680 = vmatpush1.msra.mxu0 0.0
    %681 = vmatprep.subr.mxu0 0.0
    %682 = vmatpush1.msra.mxu0 0.0
    %683 = vmatprep.subr.mxu0 0.0
    %684 = vmatpush1.msra.mxu0 0.0
    %685 = vmatprep.subr.mxu0 0.0
    %686 = vmatpush1.msra.mxu0 0.0
    %687 = vmatprep.subr.mxu0 0.0
    %688 = vmatpush1.msra.mxu0 0.0
    %689 = vmatprep.subr.mxu0 0.0
    %690 = vmatpush1.msra.mxu0 0.0
    %691 = vmatprep.subr.mxu0 0.0
    %692 = vmatpush1.msra.mxu0 0.0
    %693 = vmatprep.subr.mxu0 0.0
    %694 = vmatpush1.msra.mxu0 0.0
    %695 = vmatprep.subr.mxu0 0.0
    %696 = vmatpush1.msra.mxu0 0.0
    %697 = vmatprep.subr.mxu0 0.0
    %698 = vmatpush1.msra.mxu0 %v17
    %699 = vmatprep.subr.mxu0 0.0
    %700 = vmatpush2.msra.mxu0 0.0
    %701 = vmatprep.subr.mxu0 0.0
    %702 = vmatpush2.msra.mxu0 0.0
    %703 = vmatprep.subr.mxu0 0.0
    %704 = vmatpush2.msra.mxu0 0.0
    %705 = vmatprep.subr.mxu0 0.0
    %706 = vmatpush2.msra.mxu0 0.0
    %707 = vmatprep.subr.mxu0 0.0
    %708 = vmatpush2.msra.mxu0 0.0
    %709 = vmatprep.subr.mxu0 0.0
    %710 = vmatpush2.msra.mxu0 0.0
    %711 = vmatprep.subr.mxu0 0.0
    %712 = vmatpush2.msra.mxu0 0.0
    %713 = vmatprep.subr.mxu0 0.0
    %714 = vmatpush2.msra.mxu0 0.0
    %715 = vmatprep.subr.mxu0 0.0
    %716 = vmatpush2.msra.mxu0 0.0
    %717 = vmatprep.subr.mxu0 0.0
    %718 = vmatpush2.msra.mxu0 0.0
    %719 = vmatprep.subr.mxu0 0.0
    %720 = vmatpush2.msra.mxu0 0.0
    %721 = vmatprep.subr.mxu0 0.0
    %722 = vmatpush2.msra.mxu0 0.0
    %723 = vmatprep.subr.mxu0 0.0
    %724 = vmatpush2.msra.mxu0 0.0
    %725 = vmatprep.subr.mxu0 0.0
    %726 = vmatpush2.msra.mxu0 0.0
    %727 = vmatprep.subr.mxu0 0.0
    %728 = vmatpush2.msra.mxu0 0.0
    %729 = vmatprep.subr.mxu0 0.0
    %730 = vmatpush2.msra.mxu0 0.0
    %731 = vmatprep.mubr.f32.mxu0 0.0
    %732 = vmatmul.mubr.f32.gmra.mxu0 %v665
    %v733 = vpop.f32.mrf.mxu0
    %v734 = vadd.f32 %v660, %v733
    %v735 = vpop.f32.mrf.mxu0
    %736 = vdwg.mxu0
    %v737 = vlaneseq
    %v738 = vshrl.u32 %v737, 7
    %v739 = vsub.s32 3, %v738
    %v740 = vrot.slane %v20, %v739
    %v742 = vsel %vm135, %v734, 0
    %744 = vmatprep.subr.mxu0 0.0
    %745 = vmatpush1.msra.mxu0 0.0
    %746 = vmatprep.subr.mxu0 0.0
    %747 = vmatpush1.msra.mxu0 0.0
    %748 = vmatprep.subr.mxu0 0.0
    %749 = vmatpush1.msra.mxu0 0.0
    %750 = vmatprep.subr.mxu0 0.0
    %751 = vmatpush1.msra.mxu0 0.0
    %752 = vmatprep.subr.mxu0 0.0
    %753 = vmatpush1.msra.mxu0 0.0
    %754 = vmatprep.subr.mxu0 0.0
    %755 = vmatpush1.msra.mxu0 0.0
    %756 = vmatprep.subr.mxu0 0.0
    %757 = vmatpush1.msra.mxu0 0.0
    %758 = vmatprep.subr.mxu0 0.0
    %759 = vmatpush1.msra.mxu0 0.0
    %760 = vmatprep.subr.mxu0 0.0
    %761 = vmatpush1.msra.mxu0 0.0
    %762 = vmatprep.subr.mxu0 0.0
    %763 = vmatpush1.msra.mxu0 0.0
    %764 = vmatprep.subr.mxu0 0.0
    %765 = vmatpush1.msra.mxu0 0.0
    %766 = vmatprep.subr.mxu0 0.0
    %767 = vmatpush1.msra.mxu0 0.0
    %768 = vmatprep.subr.mxu0 0.0
    %769 = vmatpush1.msra.mxu0 0.0
    %770 = vmatprep.subr.mxu0 0.0
    %771 = vmatpush1.msra.mxu0 0.0
    %772 = vmatprep.subr.mxu0 0.0
    %773 = vmatpush1.msra.mxu0 0.0
    %774 = vmatprep.subr.mxu0 0.0
    %775 = vmatpush1.msra.mxu0 %v18
    %776 = vmatprep.subr.mxu0 0.0
    %777 = vmatpush2.msra.mxu0 0.0
    %778 = vmatprep.subr.mxu0 0.0
    %779 = vmatpush2.msra.mxu0 0.0
    %780 = vmatprep.subr.mxu0 0.0
    %781 = vmatpush2.msra.mxu0 0.0
    %782 = vmatprep.subr.mxu0 0.0
    %783 = vmatpush2.msra.mxu0 0.0
    %784 = vmatprep.subr.mxu0 0.0
    %785 = vmatpush2.msra.mxu0 0.0
    %786 = vmatprep.subr.mxu0 0.0
    %787 = vmatpush2.msra.mxu0 0.0
    %788 = vmatprep.subr.mxu0 0.0
    %789 = vmatpush2.msra.mxu0 0.0
    %790 = vmatprep.subr.mxu0 0.0
    %791 = vmatpush2.msra.mxu0 0.0
    %792 = vmatprep.subr.mxu0 0.0
    %793 = vmatpush2.msra.mxu0 0.0
    %794 = vmatprep.subr.mxu0 0.0
    %795 = vmatpush2.msra.mxu0 0.0
    %796 = vmatprep.subr.mxu0 0.0
    %797 = vmatpush2.msra.mxu0 0.0
    %798 = vmatprep.subr.mxu0 0.0
    %799 = vmatpush2.msra.mxu0 0.0
    %800 = vmatprep.subr.mxu0 0.0
    %801 = vmatpush2.msra.mxu0 0.0
    %802 = vmatprep.subr.mxu0 0.0
    %803 = vmatpush2.msra.mxu0 0.0
    %804 = vmatprep.subr.mxu0 0.0
    %805 = vmatpush2.msra.mxu0 0.0
    %806 = vmatprep.subr.mxu0 0.0
    %807 = vmatpush2.msra.mxu0 0.0
    %808 = vmatprep.mubr.f32.mxu0 0.0
    %809 = vmatmul.mubr.f32.gmra.mxu0 %v742
    %v810 = vpop.f32.mrf.mxu0
    %v811 = vadd.f32 %v740, %v810
    %v812 = vpop.f32.mrf.mxu0
    %813 = vdwg.mxu0
    %v814 = vmax.f32 %v811, 0.0
    %v815 = vlaneseq
    %v816 = vshrl.u32 %v815, 7
    %v817 = vsub.s32 0, %v816
    %v818 = vrot.slane %v19, %v817
    %v819 = vmul.f32 %v814, %v818
    %vm820 = vcmask 254976
    %v821 = vsel %vm820, %v819, 0.0
    %822 = vadd.xlane.f32.xlu0 %v821
    %v823 = vpop.xlane.xlu0 %822
    %v824 = vlaneseq
    %v825 = vshrl.u32 %v824, 7
    %v826 = vsub.s32 4, %v825
    %v827 = vrot.slane %v20, %v826
    %v828 = vadd.f32 %v823, %v827
    %vm829 = vcmask 1024
    %830 = vst.msk [vmem:[%s2] sm:$0x3] %vm829, %v828
    // Predicated region
    $region10: #{stat_arb_forward.1} parent=1 // pred_check
      _
    $region11: #{stat_arb_forward.1} parent=1 // pred_check_branch
      %832 = sbr.rel (0) target = $region13
    $region12: #{stat_arb_forward.1} parent=1 // pred_region
      _
    $region13: #{stat_arb_forward.1} parent=1 // pred_fallthru
      _
    // Predicated region
    $region14: #{stat_arb_forward.1} parent=1 // pred_check
      _
    $region15: #{stat_arb_forward.1} parent=1 // pred_check_branch
      %834 = sbr.rel (0) target = $region17
    $region16: #{stat_arb_forward.1} parent=1 // pred_region
      %s836 = ssub.s32 512, 512
      %837 = vsyncadd [#allocation3], %s836
      %s838 = sshll.u32 [#allocation2], 4
      %s839 = int_to_ptr.vmem [resolvable:$true] %s838
      %844 = dma.vmem_to_hbm [thread:$0]  %s839, 512, %s3, [#allocation3], 128, 128, 8
    $region17: #{stat_arb_forward.1} parent=1 // pred_fallthru
      _
    // Predicated region
    $region18: #{stat_arb_forward.1} parent=1 // pred_check
      _
    $region19: #{stat_arb_forward.1} parent=1 // pred_check_branch
      %846 = sbr.rel (0) target = $region21
    $region20: #{stat_arb_forward.1} parent=1 // pred_region
      _
    $region21: #{stat_arb_forward.1} parent=1 // pred_fallthru
      _
    // Predicated region
    $region22: #{stat_arb_forward.1} parent=1 // pred_check
      _
    $region23: #{stat_arb_forward.1} parent=1 // pred_check_branch
      %848 = sbr.rel (0) target = $region25
    $region24: #{stat_arb_forward.1} parent=1 // pred_region
      %849 = dma.done [#allocation3], 512
    $region25: #{stat_arb_forward.1} parent=1 // pred_fallthru
      _
    %850 = vsyncpa [#allocation3], 1

</llo_original>
